<compile_context>
chip_gen: v5e
topology: v5e:2x2
jax: 0.10.0
libtpu: 0.0.40
codegen_flags: <defaults>
</compile_context>

<pallas_src>
import jax
import jax.numpy as jnp
from jax.experimental import pallas as pl
from jax.experimental.pallas import tpu as pltpu

HIDDEN = 128                 # fixed by the module
N_GATES = 3                  # i, g, o  (f gate dropped: multiplies c0 == 0)
GATE_W = N_GATES * HIDDEN    # 384 gate lanes per direction
FUSED_W = 2 * GATE_W         # 768 gate lanes, both directions in one matmul
OUT_DIM = 2
OUT_PAD = 128                # lane-dense output slab; real logits in [:, :2]


def _round_up(n, m):
    return ((n + m - 1) // m) * m


def _bilstm_head_kernel(x_ref, wg_ref, bg_ref, wof_ref, wob_ref, bo_ref, o_ref):
    """Single-timestep bidirectional LSTM cell + padded Linear head.

    x_ref  : (TM, D)    bf16 input rows
    wg_ref : (D, 768)   bf16 fused gate weights  [i_f | g_f | o_f | i_b | g_b | o_b]
    bg_ref : (1, 768)   f32 fused gate biases (b_ih + b_hh, f gate removed)
    wof_ref: (H, 128)   f32 head weight (fwd half of W_out^T), zero-padded lanes
    wob_ref: (H, 128)   f32 head weight (bwd half of W_out^T), zero-padded lanes
    bo_ref : (1, 128)   f32 head bias, zero-padded lanes
    o_ref  : (TM, 128)  f32 output slab (logits live in [:, :OUT_DIM])
    """
    # One fused MXU contraction (bf16 in, f32 accumulate) for both directions.
    gates = jnp.dot(x_ref[...], wg_ref[...],
                    preferred_element_type=jnp.float32) + bg_ref[...]

    def cell(g3):
        i = jax.nn.sigmoid(g3[:, 0 * HIDDEN:1 * HIDDEN])
        g = jnp.tanh(g3[:, 1 * HIDDEN:2 * HIDDEN])
        o = jax.nn.sigmoid(g3[:, 2 * HIDDEN:3 * HIDDEN])
        return o * jnp.tanh(i * g)          # c0 == 0  ->  c = i * g

    h_fwd = cell(gates[:, :GATE_W])          # (TM, H)
    h_bwd = cell(gates[:, GATE_W:])          # (TM, H)

    # Linear(256, 2) head as two H-wide matmuls into one accumulator
    # (no lane-axis concat), written to a lane-dense 128-wide output slab.
    out = jnp.dot(h_fwd, wof_ref[...], preferred_element_type=jnp.float32)
    out = out + jnp.dot(h_bwd, wob_ref[...], preferred_element_type=jnp.float32)
    o_ref[...] = out + bo_ref[...]


def bilstm_net_forward(x, params, *, tm=256):
    """x: (B, D) float32. Returns (B, 2) float32."""
    B, D = x.shape
    # Tile size: multiple of 8 sublanes; up to 256 rows to fill the MXU M-dim
    # on v6e/v7x while keeping the per-tile VMEM footprint tiny.
    TM = min(tm, _round_up(B, 8))
    Bp = _round_up(B, TM)

    x_p = x.astype(jnp.bfloat16)
    if Bp != B:
        x_p = jnp.pad(x_p, ((0, Bp - B), (0, 0)))

    out_padded = pl.pallas_call(
        _bilstm_head_kernel,
        out_shape=jax.ShapeDtypeStruct((Bp, OUT_PAD), jnp.float32),
        grid_spec=pltpu.PrefetchScalarGridSpec(
            num_scalar_prefetch=0,
            grid=(Bp // TM,),
            in_specs=[
                pl.BlockSpec((TM, D), lambda i: (i, 0)),           # x tile
                pl.BlockSpec((D, FUSED_W), lambda i: (0, 0)),      # fused gate W (resident)
                pl.BlockSpec((1, FUSED_W), lambda i: (0, 0)),      # fused gate bias
                pl.BlockSpec((HIDDEN, OUT_PAD), lambda i: (0, 0)), # head W fwd
                pl.BlockSpec((HIDDEN, OUT_PAD), lambda i: (0, 0)), # head W bwd
                pl.BlockSpec((1, OUT_PAD), lambda i: (0, 0)),      # head bias
            ],
            out_specs=pl.BlockSpec((TM, OUT_PAD), lambda i: (i, 0)),
        ),
        compiler_params=pltpu.CompilerParams(
            dimension_semantics=("parallel",)),
    )(
        x_p,
        params["w_gate"],
        params["b_gate"],
        params["w_out_fwd"],
        params["w_out_bwd"],
        params["b_out"],
    )
    return out_padded[:B, :OUT_DIM]


def _take_igo(a):
    """Keep the i, g, o slices along the leading 4H axis (PyTorch order i,f,g,o)."""
    return jnp.concatenate([a[0 * HIDDEN:1 * HIDDEN],
                            a[2 * HIDDEN:3 * HIDDEN],
                            a[3 * HIDDEN:4 * HIDDEN]], axis=0)


def pack_params(w_ih_fwd, b_ih_fwd, b_hh_fwd,
                w_ih_bwd, b_ih_bwd, b_hh_bwd, w_out, b_out):
    """Repack PyTorch-shaped parameters into the kernel layout."""
    # Fused gate weight: (D, 2*3H), bf16. f-gate columns dropped (dead vs c0=0).
    w_gate = jnp.concatenate([_take_igo(w_ih_fwd), _take_igo(w_ih_bwd)], axis=0).T
    b_gate = jnp.concatenate([_take_igo(b_ih_fwd + b_hh_fwd),
                              _take_igo(b_ih_bwd + b_hh_bwd)], axis=0)[None, :]

    w_out_t = w_out.T                                             # (2H, 2)
    w_out_fwd = jnp.zeros((HIDDEN, OUT_PAD), jnp.float32)
    w_out_fwd = w_out_fwd.at[:, :OUT_DIM].set(w_out_t[:HIDDEN])
    w_out_bwd = jnp.zeros((HIDDEN, OUT_PAD), jnp.float32)
    w_out_bwd = w_out_bwd.at[:, :OUT_DIM].set(w_out_t[HIDDEN:])
    b_out_pad = jnp.zeros((1, OUT_PAD), jnp.float32)
    b_out_pad = b_out_pad.at[0, :OUT_DIM].set(b_out)

    return {
        "w_gate": w_gate.astype(jnp.bfloat16),   # (D, 768) bf16
        "b_gate": b_gate.astype(jnp.float32),    # (1, 768) f32
        "w_out_fwd": w_out_fwd,                  # (128, 128) f32 (zero-padded)
        "w_out_bwd": w_out_bwd,                  # (128, 128) f32 (zero-padded)
        "b_out": b_out_pad,                      # (1, 128) f32 (zero-padded)
    }


def init_params(key, input_size):
    """Deterministic synthetic parameters matching nn.LSTM / nn.Linear shapes."""
    ks = jax.random.split(key, 8)
    scale_lstm = 1.0 / jnp.sqrt(jnp.float32(HIDDEN))
    scale_lin = 1.0 / jnp.sqrt(jnp.float32(2 * HIDDEN))

    def u(k, shape, scale):
        return jax.random.uniform(k, shape, jnp.float32, -scale, scale)

    w_ih_fwd = u(ks[0], (4 * HIDDEN, input_size), scale_lstm)   # weight_ih_l0
    b_ih_fwd = u(ks[1], (4 * HIDDEN,), scale_lstm)              # bias_ih_l0
    b_hh_fwd = u(ks[2], (4 * HIDDEN,), scale_lstm)              # bias_hh_l0
    w_ih_bwd = u(ks[3], (4 * HIDDEN, input_size), scale_lstm)   # weight_ih_l0_reverse
    b_ih_bwd = u(ks[4], (4 * HIDDEN,), scale_lstm)              # bias_ih_l0_reverse
    b_hh_bwd = u(ks[5], (4 * HIDDEN,), scale_lstm)              # bias_hh_l0_reverse
    w_out = u(ks[6], (OUT_DIM, 2 * HIDDEN), scale_lin)          # Linear.weight
    b_out = u(ks[7], (OUT_DIM,), scale_lin)                     # Linear.bias
    # NOTE: weight_hh_l0 / weight_hh_l0_reverse are unused because h0 == 0.
    # TODO(synk): if seq_len > 1 or nonzero initial state is ever needed, the
    # f gate and W_hh must be reinstated.

    return pack_params(w_ih_fwd, b_ih_fwd, b_hh_fwd,
                       w_ih_bwd, b_ih_bwd, b_hh_bwd, w_out, b_out)


def reference_forward(x, params):
    """Pure-JAX reference of the identical math (same packed params, bf16 gate matmul)."""
    xb = x.astype(jnp.bfloat16)
    gates = jnp.dot(xb, params["w_gate"],
                    preferred_element_type=jnp.float32) + params["b_gate"]

    def cell(g3):
        i = jax.nn.sigmoid(g3[:, :HIDDEN])
        g = jnp.tanh(g3[:, HIDDEN:2 * HIDDEN])
        o = jax.nn.sigmoid(g3[:, 2 * HIDDEN:])
        return o * jnp.tanh(i * g)

    h_f = cell(gates[:, :GATE_W])
    h_b = cell(gates[:, GATE_W:])
    out = (jnp.dot(h_f, params["w_out_fwd"], preferred_element_type=jnp.float32)
           + jnp.dot(h_b, params["w_out_bwd"], preferred_element_type=jnp.float32)
           + params["b_out"])
    return out[:, :OUT_DIM]


if __name__ == "__main__":
    key = jax.random.PRNGKey(0)
    k_x, k_x2, k_p = jax.random.split(key, 3)

    B, input_size = 8, 64
    # x as fed to the module (flat per-sample; x.view(B, 1, -1) -> (B, 1, 64))
    x = jax.random.normal(k_x, (B, input_size), jnp.float32)
    params = init_params(k_p, input_size)

    out = jax.block_until_ready(bilstm_net_forward(x, params))
    ref = reference_forward(x, params)
    assert out.shape == (B, OUT_DIM)
    assert jnp.allclose(out, ref, atol=1e-2, rtol=1e-2), (
        float(jnp.max(jnp.abs(out - ref))))

    # Second check: non-multiple batch exercising the batch grid + padding path.
    B2 = 300
    x2 = jax.random.normal(k_x2, (B2, input_size), jnp.float32)
    out2 = jax.block_until_ready(bilstm_net_forward(x2, params))
    ref2 = reference_forward(x2, params)
    assert out2.shape == (B2, OUT_DIM)
    assert jnp.allclose(out2, ref2, atol=1e-2, rtol=1e-2), (
        float(jnp.max(jnp.abs(out2 - ref2))))

    print("KERNEL_OK")
</pallas_src>

<mosaic_0001>
module attributes {stable_mosaic.version = 11 : i64} {
  func.func @_bilstm_head_kernel(%arg0: i32, %arg1: memref<8x64xbf16, #tpu.memory_space<vmem>>, %arg2: memref<64x768xbf16, #tpu.memory_space<vmem>>, %arg3: memref<1x768xf32, #tpu.memory_space<vmem>>, %arg4: memref<128x128xf32, #tpu.memory_space<vmem>>, %arg5: memref<128x128xf32, #tpu.memory_space<vmem>>, %arg6: memref<1x128xf32, #tpu.memory_space<vmem>>, %arg7: memref<8x128xf32, #tpu.memory_space<vmem>>) attributes {dimension_semantics = [#tpu.dimension_semantics<parallel>], iteration_bounds = array<i64: 1>, scalar_prefetch = 0 : i64, scratch_operands = 0 : i64, tpu.core_type = #tpu.core_type<tc>, window_params = [{transform_indices = @transform_0, window_bounds = array<i64: 8, 64>}, {pipeline_mode = #tpu.pipeline_mode<synchronous>, transform_indices = @transform_1, window_bounds = array<i64: 64, 768>}, {pipeline_mode = #tpu.pipeline_mode<synchronous>, transform_indices = @transform_2, window_bounds = array<i64: 1, 768>}, {pipeline_mode = #tpu.pipeline_mode<synchronous>, transform_indices = @transform_3, window_bounds = array<i64: 128, 128>}, {pipeline_mode = #tpu.pipeline_mode<synchronous>, transform_indices = @transform_4, window_bounds = array<i64: 128, 128>}, {pipeline_mode = #tpu.pipeline_mode<synchronous>, transform_indices = @transform_5, window_bounds = array<i64: 1, 128>}, {transform_indices = @transform_6, window_bounds = array<i64: 8, 128>}]} {
    %c0 = arith.constant 0 : index
    %c0_0 = arith.constant 0 : index
    %0 = vector.load %arg1[%c0, %c0_0] : memref<8x64xbf16, #tpu.memory_space<vmem>>, vector<8x64xbf16>
    %c0_1 = arith.constant 0 : index
    %c0_2 = arith.constant 0 : index
    %1 = vector.load %arg2[%c0_1, %c0_2] : memref<64x768xbf16, #tpu.memory_space<vmem>>, vector<64x768xbf16>
    %cst = arith.constant dense<0.000000e+00> : vector<8x768xf32>
    %2 = tpu.matmul %0, %1, %cst {dimension_numbers = #tpu.dot_dimension_numbers<[1], [0], [0], [1], [0, 0, 1, 1], [], []>} : vector<8x64xbf16>, vector<64x768xbf16>, vector<8x768xf32> -> vector<8x768xf32>
    %c0_3 = arith.constant 0 : index
    %c0_4 = arith.constant 0 : index
    %3 = vector.load %arg3[%c0_3, %c0_4] : memref<1x768xf32, #tpu.memory_space<vmem>>, vector<1x768xf32>
    %4 = vector.broadcast %3 : vector<1x768xf32> to vector<8x768xf32>
    %5 = arith.addf %2, %4 : vector<8x768xf32>
    %6 = vector.extract_strided_slice %5 {offsets = [0, 0], sizes = [8, 384], strides = [1, 1]} : vector<8x768xf32> to vector<8x384xf32>
    %7 = vector.extract_strided_slice %6 {offsets = [0, 0], sizes = [8, 128], strides = [1, 1]} : vector<8x384xf32> to vector<8x128xf32>
    %8 = arith.negf %7 : vector<8x128xf32>
    %9 = math.exp %8 : vector<8x128xf32>
    %cst_5 = arith.constant 1.000000e+00 : f32
    %10 = vector.broadcast %cst_5 : f32 to vector<8x128xf32>
    %11 = arith.addf %10, %9 : vector<8x128xf32>
    %12 = arith.divf %10, %11 : vector<8x128xf32>
    %13 = vector.extract_strided_slice %6 {offsets = [0, 128], sizes = [8, 128], strides = [1, 1]} : vector<8x384xf32> to vector<8x128xf32>
    %14 = math.tanh %13 : vector<8x128xf32>
    %15 = vector.extract_strided_slice %6 {offsets = [0, 256], sizes = [8, 128], strides = [1, 1]} : vector<8x384xf32> to vector<8x128xf32>
    %16 = arith.negf %15 : vector<8x128xf32>
    %17 = math.exp %16 : vector<8x128xf32>
    %cst_6 = arith.constant 1.000000e+00 : f32
    %18 = vector.broadcast %cst_6 : f32 to vector<8x128xf32>
    %19 = arith.addf %18, %17 : vector<8x128xf32>
    %20 = arith.divf %18, %19 : vector<8x128xf32>
    %21 = arith.mulf %12, %14 : vector<8x128xf32>
    %22 = math.tanh %21 : vector<8x128xf32>
    %23 = arith.mulf %20, %22 : vector<8x128xf32>
    %24 = vector.extract_strided_slice %5 {offsets = [0, 384], sizes = [8, 384], strides = [1, 1]} : vector<8x768xf32> to vector<8x384xf32>
    %25 = vector.extract_strided_slice %24 {offsets = [0, 0], sizes = [8, 128], strides = [1, 1]} : vector<8x384xf32> to vector<8x128xf32>
    %26 = arith.negf %25 : vector<8x128xf32>
    %27 = math.exp %26 : vector<8x128xf32>
    %cst_7 = arith.constant 1.000000e+00 : f32
    %28 = vector.broadcast %cst_7 : f32 to vector<8x128xf32>
    %29 = arith.addf %28, %27 : vector<8x128xf32>
    %30 = arith.divf %28, %29 : vector<8x128xf32>
    %31 = vector.extract_strided_slice %24 {offsets = [0, 128], sizes = [8, 128], strides = [1, 1]} : vector<8x384xf32> to vector<8x128xf32>
    %32 = math.tanh %31 : vector<8x128xf32>
    %33 = vector.extract_strided_slice %24 {offsets = [0, 256], sizes = [8, 128], strides = [1, 1]} : vector<8x384xf32> to vector<8x128xf32>
    %34 = arith.negf %33 : vector<8x128xf32>
    %35 = math.exp %34 : vector<8x128xf32>
    %cst_8 = arith.constant 1.000000e+00 : f32
    %36 = vector.broadcast %cst_8 : f32 to vector<8x128xf32>
    %37 = arith.addf %36, %35 : vector<8x128xf32>
    %38 = arith.divf %36, %37 : vector<8x128xf32>
    %39 = arith.mulf %30, %32 : vector<8x128xf32>
    %40 = math.tanh %39 : vector<8x128xf32>
    %41 = arith.mulf %38, %40 : vector<8x128xf32>
    %c0_9 = arith.constant 0 : index
    %c0_10 = arith.constant 0 : index
    %42 = vector.load %arg4[%c0_9, %c0_10] : memref<128x128xf32, #tpu.memory_space<vmem>>, vector<128x128xf32>
    %cst_11 = arith.constant dense<0.000000e+00> : vector<8x128xf32>
    %43 = tpu.matmul %23, %42, %cst_11 {dimension_numbers = #tpu.dot_dimension_numbers<[1], [0], [0], [1], [0, 0, 1, 1], [], []>} : vector<8x128xf32>, vector<128x128xf32>, vector<8x128xf32> -> vector<8x128xf32>
    %c0_12 = arith.constant 0 : index
    %c0_13 = arith.constant 0 : index
    %44 = vector.load %arg5[%c0_12, %c0_13] : memref<128x128xf32, #tpu.memory_space<vmem>>, vector<128x128xf32>
    %cst_14 = arith.constant dense<0.000000e+00> : vector<8x128xf32>
    %45 = tpu.matmul %41, %44, %cst_14 {dimension_numbers = #tpu.dot_dimension_numbers<[1], [0], [0], [1], [0, 0, 1, 1], [], []>} : vector<8x128xf32>, vector<128x128xf32>, vector<8x128xf32> -> vector<8x128xf32>
    %46 = arith.addf %43, %45 : vector<8x128xf32>
    %c0_15 = arith.constant 0 : index
    %c0_16 = arith.constant 0 : index
    %47 = vector.load %arg6[%c0_15, %c0_16] : memref<1x128xf32, #tpu.memory_space<vmem>>, vector<1x128xf32>
    %48 = vector.broadcast %47 : vector<1x128xf32> to vector<8x128xf32>
    %49 = arith.addf %46, %48 : vector<8x128xf32>
    %c0_17 = arith.constant 0 : index
    %c0_18 = arith.constant 0 : index
    %50 = vector.load %arg7[%c0_17, %c0_18] : memref<8x128xf32, #tpu.memory_space<vmem>>, vector<8x128xf32>
    tpu.vector_store %arg7[%c0_17, %c0_18], %49 {strides = array<i32>} : memref<8x128xf32, #tpu.memory_space<vmem>>, vector<8x128xf32>,
    return
  }
  func.func @transform_0(%arg0: i32) -> (i32, i32) {
    %c0_i32 = arith.constant 0 : i32
    %c0_i32_0 = arith.constant 0 : i32
    return %arg0, %c0_i32 : i32, i32
  }
  func.func @transform_1(%arg0: i32) -> (i32, i32) {
    %c0_i32 = arith.constant 0 : i32
    %c0_i32_0 = arith.constant 0 : i32
    %c0_i32_1 = arith.constant 0 : i32
    return %c0_i32, %c0_i32_0 : i32, i32
  }
  func.func @transform_2(%arg0: i32) -> (i32, i32) {
    %c0_i32 = arith.constant 0 : i32
    %c0_i32_0 = arith.constant 0 : i32
    %c0_i32_1 = arith.constant 0 : i32
    return %c0_i32, %c0_i32_0 : i32, i32
  }
  func.func @transform_3(%arg0: i32) -> (i32, i32) {
    %c0_i32 = arith.constant 0 : i32
    %c0_i32_0 = arith.constant 0 : i32
    %c0_i32_1 = arith.constant 0 : i32
    return %c0_i32, %c0_i32_0 : i32, i32
  }
  func.func @transform_4(%arg0: i32) -> (i32, i32) {
    %c0_i32 = arith.constant 0 : i32
    %c0_i32_0 = arith.constant 0 : i32
    %c0_i32_1 = arith.constant 0 : i32
    return %c0_i32, %c0_i32_0 : i32, i32
  }
  func.func @transform_5(%arg0: i32) -> (i32, i32) {
    %c0_i32 = arith.constant 0 : i32
    %c0_i32_0 = arith.constant 0 : i32
    %c0_i32_1 = arith.constant 0 : i32
    return %c0_i32, %c0_i32_0 : i32, i32
  }
  func.func @transform_6(%arg0: i32) -> (i32, i32) {
    %c0_i32 = arith.constant 0 : i32
    %c0_i32_0 = arith.constant 0 : i32
    return %arg0, %c0_i32 : i32, i32
  }
}

</mosaic_0001>

<llo_original>
// kernel: tpu_custom_call.1
$region0: #{tpu_custom_call.1}
  #allocation0 [shape = 'u32[]', space=smem, size = 0x4, offset = 0x4, fixed_abs, tag = 'smem constant byte address 0x4 - core index']
  #allocation1 [shape = 'u32[72,128]{1,0:T(1,128)}', space=vmem, size = 0x9000, scoped, tag = 'internal scratch']
  %s0 = inlined_call_operand.hbm [shape: bf16[8,64], index: 0, kind: input, shape index: {}]
  %s1 = inlined_call_operand.hbm [shape: bf16[64,768], index: 1, kind: input, shape index: {}]
  %s2 = inlined_call_operand.hbm [shape: f32[1,768], index: 2, kind: input, shape index: {}]
  %s3 = inlined_call_operand.hbm [shape: f32[128,128], index: 3, kind: input, shape index: {}]
  %s4 = inlined_call_operand.hbm [shape: f32[128,128], index: 4, kind: input, shape index: {}]
  %s5 = inlined_call_operand.vmem [shape: f32[1,128], index: 5, kind: input, shape index: {}]
  %s6 = inlined_call_operand.hbm [shape: f32[8,128], index: 6, kind: output, shape index: {}]
  %s7 = sld [smem:[#allocation0]]
  $region54: #{tpu_custom_call.1} parent=0
    _
  %s9 = ssub.s32 1, %s7
  %s10 = scalar_select 0, %s9, %s7
  $region1: #{tpu_custom_call.1} parent=0
    #allocation2 [shape = 'u8[2048]{0}', space=vmem, size = 0x800, scoped, tag = 'input window, operand 0, single buffered']
    #allocation3 [shape = 's32[1]{0}', space=sflag, size = 0x4, scoped, tag = 'scoped memory for tpu_custom_call.1']
    #allocation4 [shape = 's32[1]{0}', space=sflag, size = 0x4, scoped, tag = 'scoped memory for tpu_custom_call.1']
    #allocation5 [shape = 'u8[98304]{0}', space=vmem, size = 0x18000, scoped, tag = 'input window, operand 1, single buffered']
    #allocation6 [shape = 's32[1]{0}', space=sflag, size = 0x4, scoped, tag = 'scoped memory for tpu_custom_call.1']
    #allocation7 [shape = 'u8[3072]{0}', space=vmem, size = 0xc00, scoped, tag = 'input window, operand 2, single buffered']
    #allocation8 [shape = 'u8[65536]{0}', space=vmem, size = 0x10000, scoped, tag = 'input window, operand 3, single buffered']
    #allocation9 [shape = 's32[1]{0}', space=sflag, size = 0x4, scoped, tag = 'scoped memory for tpu_custom_call.1']
    #allocation10 [shape = 'u8[65536]{0}', space=vmem, size = 0x10000, scoped, tag = 'input window, operand 4, single buffered']
    #allocation11 [shape = 'u8[4096]{0}', space=vmem, size = 0x1000, scoped, tag = 'output window, operand 0, single buffered']
    %11 = vsyncpa [#allocation3], 0
    %12 = vsyncpa [#allocation6], 0
    %13 = vsyncpa [#allocation9], 0
    %14 = vsyncpa [#allocation4], 0
    // Predicated region
    $region2: #{tpu_custom_call.1} parent=1 // pred_check
      _
    $region3: #{tpu_custom_call.1} parent=1 // pred_check_branch
      %16 = sbr.rel (0) target = $region5
    $region4: #{tpu_custom_call.1} parent=1 // pred_region
      %18 = vsyncadd [#allocation3], 0
      %s20 = sshll.u32 %s0, 4
      %s21 = int_to_ptr.hbm [resolvable:$true] %s20
      %s22 = sshll.u32 [#allocation2], 4
      %s23 = int_to_ptr.vmem [resolvable:$true] %s22
      %25 = dma.hbm_to_vmem [thread:$0]  %s21, 64, %s23, [#allocation3]
    $region5: #{tpu_custom_call.1} parent=1 // pred_fallthru
      _
    // Predicated region
    $region6: #{tpu_custom_call.1} parent=1 // pred_check
      _
    $region7: #{tpu_custom_call.1} parent=1 // pred_check_branch
      %27 = sbr.rel (0) target = $region9
    $region8: #{tpu_custom_call.1} parent=1 // pred_region
      %29 = vsyncadd [#allocation6], 0
      %s30 = sshll.u32 %s1, 4
      %s31 = int_to_ptr.hbm [resolvable:$true] %s30
      %s32 = sshll.u32 [#allocation5], 4
      %s33 = int_to_ptr.vmem [resolvable:$true] %s32
      %38 = dma.hbm_to_vmem [thread:$0]  %s31, 3072, %s33, [#allocation6], 384, 384, 24
    $region9: #{tpu_custom_call.1} parent=1 // pred_fallthru
      _
    // Predicated region
    $region10: #{tpu_custom_call.1} parent=1 // pred_check
      _
    $region11: #{tpu_custom_call.1} parent=1 // pred_check_branch
      %40 = sbr.rel (0) target = $region13
    $region12: #{tpu_custom_call.1} parent=1 // pred_region
      %42 = vsyncadd [#allocation6], 0
      %s44 = sshll.u32 %s2, 4
      %s45 = int_to_ptr.hbm [resolvable:$true] %s44
      %s46 = sshll.u32 [#allocation7], 4
      %s47 = int_to_ptr.vmem [resolvable:$true] %s46
      %49 = dma.hbm_to_vmem [thread:$0]  %s45, 96, %s47, [#allocation6]
    $region13: #{tpu_custom_call.1} parent=1 // pred_fallthru
      _
    // Predicated region
    $region14: #{tpu_custom_call.1} parent=1 // pred_check
      _
    $region15: #{tpu_custom_call.1} parent=1 // pred_check_branch
      %51 = sbr.rel (0) target = $region17
    $region16: #{tpu_custom_call.1} parent=1 // pred_region
      %53 = vsyncadd [#allocation9], 0
      %s54 = sshll.u32 %s3, 4
      %s55 = int_to_ptr.hbm [resolvable:$true] %s54
      %s56 = sshll.u32 [#allocation8], 4
      %s57 = int_to_ptr.vmem [resolvable:$true] %s56
      %62 = dma.hbm_to_vmem [thread:$0]  %s55, 2048, %s57, [#allocation9], 128, 128, 8
    $region17: #{tpu_custom_call.1} parent=1 // pred_fallthru
      _
    // Predicated region
    $region18: #{tpu_custom_call.1} parent=1 // pred_check
      _
    $region19: #{tpu_custom_call.1} parent=1 // pred_check_branch
      %64 = sbr.rel (0) target = $region21
    $region20: #{tpu_custom_call.1} parent=1 // pred_region
      %66 = vsyncadd [#allocation9], 0
      %s67 = sshll.u32 %s4, 4
      %s68 = int_to_ptr.hbm [resolvable:$true] %s67
      %s69 = sshll.u32 [#allocation10], 4
      %s70 = int_to_ptr.vmem [resolvable:$true] %s69
      %75 = dma.hbm_to_vmem [thread:$0]  %s68, 2048, %s70, [#allocation9], 128, 128, 8
    $region21: #{tpu_custom_call.1} parent=1 // pred_fallthru
      _
    // Predicated region
    $region22: #{tpu_custom_call.1} parent=1 // pred_check
      _
    $region23: #{tpu_custom_call.1} parent=1 // pred_check_branch
      %77 = sbr.rel (0) target = $region25
    $region24: #{tpu_custom_call.1} parent=1 // pred_region
      _
    $region25: #{tpu_custom_call.1} parent=1 // pred_fallthru
      _
    // Predicated region
    $region26: #{tpu_custom_call.1} parent=1 // pred_check
      _
    $region27: #{tpu_custom_call.1} parent=1 // pred_check_branch
      %79 = sbr.rel (0) target = $region29
    $region28: #{tpu_custom_call.1} parent=1 // pred_region
      %81 = dma.done [#allocation3], 64
    $region29: #{tpu_custom_call.1} parent=1 // pred_fallthru
      _
    // Predicated region
    $region30: #{tpu_custom_call.1} parent=1 // pred_check
      _
    $region31: #{tpu_custom_call.1} parent=1 // pred_check_branch
      %83 = sbr.rel (0) target = $region33
    $region32: #{tpu_custom_call.1} parent=1 // pred_region
      %85 = dma.done [#allocation6], 3072
    $region33: #{tpu_custom_call.1} parent=1 // pred_fallthru
      _
    // Predicated region
    $region34: #{tpu_custom_call.1} parent=1 // pred_check
      _
    $region35: #{tpu_custom_call.1} parent=1 // pred_check_branch
      %87 = sbr.rel (0) target = $region37
    $region36: #{tpu_custom_call.1} parent=1 // pred_region
      %89 = dma.done [#allocation6], 96
    $region37: #{tpu_custom_call.1} parent=1 // pred_fallthru
      _
    // Predicated region
    $region38: #{tpu_custom_call.1} parent=1 // pred_check
      _
    $region39: #{tpu_custom_call.1} parent=1 // pred_check_branch
      %91 = sbr.rel (0) target = $region41
    $region40: #{tpu_custom_call.1} parent=1 // pred_region
      %93 = dma.done [#allocation9], 2048
    $region41: #{tpu_custom_call.1} parent=1 // pred_fallthru
      _
    // Predicated region
    $region42: #{tpu_custom_call.1} parent=1 // pred_check
      _
    $region43: #{tpu_custom_call.1} parent=1 // pred_check_branch
      %95 = sbr.rel (0) target = $region45
    $region44: #{tpu_custom_call.1} parent=1 // pred_region
      %97 = dma.done [#allocation9], 2048
    $region45: #{tpu_custom_call.1} parent=1 // pred_fallthru
      _
    %v99 = vld [vmem:[#allocation2] sm:$0xf]
    %v100 = vld [vmem:[#allocation5] sm:$0xff]
    %v101 = vld [vmem:[#allocation5 + $0x8] sm:$0xff]
    %v102 = vld [vmem:[#allocation5 + $0x10] sm:$0xff]
    %v103 = vld [vmem:[#allocation5 + $0x18] sm:$0xff]
    %v104 = vld [vmem:[#allocation5 + $0x20] sm:$0xff]
    %v105 = vld [vmem:[#allocation5 + $0x28] sm:$0xff]
    %v106 = vld [vmem:[#allocation5 + $0x30] sm:$0xff]
    %v107 = vld [vmem:[#allocation5 + $0x38] sm:$0xff]
    %v108 = vld [vmem:[#allocation5 + $0x40] sm:$0xff]
    %v109 = vld [vmem:[#allocation5 + $0x48] sm:$0xff]
    %v110 = vld [vmem:[#allocation5 + $0x50] sm:$0xff]
    %v111 = vld [vmem:[#allocation5 + $0x58] sm:$0xff]
    %v112 = vld [vmem:[#allocation5 + $0x60] sm:$0xff]
    %v113 = vld [vmem:[#allocation5 + $0x68] sm:$0xff]
    %v114 = vld [vmem:[#allocation5 + $0x70] sm:$0xff]
    %v115 = vld [vmem:[#allocation5 + $0x78] sm:$0xff]
    %v116 = vld [vmem:[#allocation5 + $0x80] sm:$0xff]
    %v117 = vld [vmem:[#allocation5 + $0x88] sm:$0xff]
    %v118 = vld [vmem:[#allocation5 + $0x90] sm:$0xff]
    %v119 = vld [vmem:[#allocation5 + $0x98] sm:$0xff]
    %v120 = vld [vmem:[#allocation5 + $0xa0] sm:$0xff]
    %v121 = vld [vmem:[#allocation5 + $0xa8] sm:$0xff]
    %v122 = vld [vmem:[#allocation5 + $0xb0] sm:$0xff]
    %v123 = vld [vmem:[#allocation5 + $0xb8] sm:$0xff]
    %v124 = vld [vmem:[#allocation7] sm:$0x3f]
    %v126 = vperm.slane %v124, 0
    %v127 = vperm.slane %v124, 1
    %v128 = vperm.slane %v124, 2
    %v129 = vperm.slane %v124, 3
    %v130 = vperm.slane %v124, 4
    %v131 = vperm.slane %v124, 5
    %v162 = vunpack.c.l.b16 %v100
    %v163 = vunpack.c.h.b16 %v100
    %v164 = vunpack.c.l.b16 %v101
    %v165 = vunpack.c.h.b16 %v101
    %v166 = vunpack.c.l.b16 %v102
    %v167 = vunpack.c.h.b16 %v102
    %v168 = vunpack.c.l.b16 %v103
    %v169 = vunpack.c.h.b16 %v103
    %v170 = vunpack.c.l.b16 %v104
    %v171 = vunpack.c.h.b16 %v104
    %v172 = vunpack.c.l.b16 %v105
    %v173 = vunpack.c.h.b16 %v105
    %v174 = vunpack.c.l.b16 %v106
    %v175 = vunpack.c.h.b16 %v106
    %v176 = vunpack.c.l.b16 %v107
    %v177 = vunpack.c.h.b16 %v107
    %v178 = vunpack.c.l.b16 %v108
    %v179 = vunpack.c.h.b16 %v108
    %v180 = vunpack.c.l.b16 %v109
    %v181 = vunpack.c.h.b16 %v109
    %v182 = vunpack.c.l.b16 %v110
    %v183 = vunpack.c.h.b16 %v110
    %v184 = vunpack.c.l.b16 %v111
    %v185 = vunpack.c.h.b16 %v111
    %v186 = vunpack.c.l.b16 %v112
    %v187 = vunpack.c.h.b16 %v112
    %v188 = vunpack.c.l.b16 %v113
    %v189 = vunpack.c.h.b16 %v113
    %v190 = vunpack.c.l.b16 %v114
    %v191 = vunpack.c.h.b16 %v114
    %v192 = vunpack.c.l.b16 %v115
    %v193 = vunpack.c.h.b16 %v115
    %v194 = vunpack.c.l.b16 %v116
    %v195 = vunpack.c.h.b16 %v116
    %v196 = vunpack.c.l.b16 %v117
    %v197 = vunpack.c.h.b16 %v117
    %v198 = vunpack.c.l.b16 %v118
    %v199 = vunpack.c.h.b16 %v118
    %v200 = vunpack.c.l.b16 %v119
    %v201 = vunpack.c.h.b16 %v119
    %v202 = vunpack.c.l.b16 %v120
    %v203 = vunpack.c.h.b16 %v120
    %v204 = vunpack.c.l.b16 %v121
    %v205 = vunpack.c.h.b16 %v121
    %v206 = vunpack.c.l.b16 %v122
    %v207 = vunpack.c.h.b16 %v122
    %v208 = vunpack.c.l.b16 %v123
    %v209 = vunpack.c.h.b16 %v123
    %v210 = vpack.c.b16 %v168, %v162
    %v211 = vpack.c.b16 %v169, %v163
    %v212 = vpack.c.b16 %v170, %v164
    %v213 = vpack.c.b16 %v171, %v165
    %v214 = vpack.c.b16 %v172, %v166
    %v215 = vpack.c.b16 %v173, %v167
    %v216 = vpack.c.b16 %v180, %v174
    %v217 = vpack.c.b16 %v181, %v175
    %v218 = vpack.c.b16 %v182, %v176
    %v219 = vpack.c.b16 %v183, %v177
    %v220 = vpack.c.b16 %v184, %v178
    %v221 = vpack.c.b16 %v185, %v179
    %v222 = vpack.c.b16 %v192, %v186
    %v223 = vpack.c.b16 %v193, %v187
    %v224 = vpack.c.b16 %v194, %v188
    %v225 = vpack.c.b16 %v195, %v189
    %v226 = vpack.c.b16 %v196, %v190
    %v227 = vpack.c.b16 %v197, %v191
    %v228 = vpack.c.b16 %v204, %v198
    %v229 = vpack.c.b16 %v205, %v199
    %v230 = vpack.c.b16 %v206, %v200
    %v231 = vpack.c.b16 %v207, %v201
    %v232 = vpack.c.b16 %v208, %v202
    %v233 = vpack.c.b16 %v209, %v203
    %vm258 = vcmask 523264
    %v260 = vsel %vm258, %v99, 0
    %262 = vmatpush.bf16.msra.mxu0 0
    %263 = vmatpush.bf16.msra.mxu0 0
    %264 = vmatpush.bf16.msra.mxu0 0
    %265 = vmatpush.bf16.msra.mxu0 0
    %266 = vmatpush.bf16.msra.mxu0 %v228
    %267 = vmatpush.bf16.msra.mxu0 %v222
    %268 = vmatpush.bf16.msra.mxu0 %v216
    %269 = vmatpush.bf16.msra.mxu0 %v210
    %270 = vmatmul.bf16.gmra.mxu0 %v260
    %v271 = vpop.f32.mrf.mxu0
    %v272 = vadd.f32 %v126, %v271
    %v273 = vpop.f32.mrf.mxu0
    %274 = vdwg.mxu0
    %275 = vmatpush.bf16.msra.mxu0 0
    %276 = vmatpush.bf16.msra.mxu0 0
    %277 = vmatpush.bf16.msra.mxu0 0
    %278 = vmatpush.bf16.msra.mxu0 0
    %279 = vmatpush.bf16.msra.mxu0 %v229
    %280 = vmatpush.bf16.msra.mxu0 %v223
    %281 = vmatpush.bf16.msra.mxu0 %v217
    %282 = vmatpush.bf16.msra.mxu0 %v211
    %283 = vmatmul.bf16.gmra.mxu0 %v260
    %v284 = vpop.f32.mrf.mxu0
    %v285 = vadd.f32 %v127, %v284
    %v286 = vpop.f32.mrf.mxu0
    %287 = vdwg.mxu0
    %288 = vmatpush.bf16.msra.mxu0 0
    %289 = vmatpush.bf16.msra.mxu0 0
    %290 = vmatpush.bf16.msra.mxu0 0
    %291 = vmatpush.bf16.msra.mxu0 0
    %292 = vmatpush.bf16.msra.mxu0 %v230
    %293 = vmatpush.bf16.msra.mxu0 %v224
    %294 = vmatpush.bf16.msra.mxu0 %v218
    %295 = vmatpush.bf16.msra.mxu0 %v212
    %296 = vmatmul.bf16.gmra.mxu0 %v260
    %v297 = vpop.f32.mrf.mxu0
    %v298 = vadd.f32 %v128, %v297
    %v299 = vpop.f32.mrf.mxu0
    %300 = vdwg.mxu0
    %301 = vmatpush.bf16.msra.mxu0 0
    %302 = vmatpush.bf16.msra.mxu0 0
    %303 = vmatpush.bf16.msra.mxu0 0
    %304 = vmatpush.bf16.msra.mxu0 0
    %305 = vmatpush.bf16.msra.mxu0 %v231
    %306 = vmatpush.bf16.msra.mxu0 %v225
    %307 = vmatpush.bf16.msra.mxu0 %v219
    %308 = vmatpush.bf16.msra.mxu0 %v213
    %309 = vmatmul.bf16.gmra.mxu0 %v260
    %v310 = vpop.f32.mrf.mxu0
    %v311 = vadd.f32 %v129, %v310
    %v312 = vpop.f32.mrf.mxu0
    %313 = vdwg.mxu0
    %314 = vmatpush.bf16.msra.mxu0 0
    %315 = vmatpush.bf16.msra.mxu0 0
    %316 = vmatpush.bf16.msra.mxu0 0
    %317 = vmatpush.bf16.msra.mxu0 0
    %318 = vmatpush.bf16.msra.mxu0 %v232
    %319 = vmatpush.bf16.msra.mxu0 %v226
    %320 = vmatpush.bf16.msra.mxu0 %v220
    %321 = vmatpush.bf16.msra.mxu0 %v214
    %322 = vmatmul.bf16.gmra.mxu0 %v260
    %v323 = vpop.f32.mrf.mxu0
    %v324 = vadd.f32 %v130, %v323
    %v325 = vpop.f32.mrf.mxu0
    %326 = vdwg.mxu0
    %327 = vmatpush.bf16.msra.mxu0 0
    %328 = vmatpush.bf16.msra.mxu0 0
    %329 = vmatpush.bf16.msra.mxu0 0
    %330 = vmatpush.bf16.msra.mxu0 0
    %331 = vmatpush.bf16.msra.mxu0 %v233
    %332 = vmatpush.bf16.msra.mxu0 %v227
    %333 = vmatpush.bf16.msra.mxu0 %v221
    %334 = vmatpush.bf16.msra.mxu0 %v215
    %335 = vmatmul.bf16.gmra.mxu0 %v260
    %v336 = vpop.f32.mrf.mxu0
    %v337 = vadd.f32 %v131, %v336
    %v338 = vpop.f32.mrf.mxu0
    %339 = vdwg.mxu0
    %v340 = vxor.u32 %v272, 2147483648
    %v341 = vmul.f32 %v340, 1.442695
    %v342 = vpow.pop %v341
    %v343 = vadd.f32 %v342, 1.0
    %v344 = vrcp.pop %v343
    %v345 = vmul.f32 %v343, %v344
    %v346 = vsub.f32 1.0, %v345
    %v347 = vmul.f32 %v344, %v346
    %v348 = vadd.f32 %v344, %v347
    %vm349 = vweird.f32 %v343
    %vm350 = vweird.f32 %v344
    %vm351 = vmor %vm349, %vm350
    %v352 = vsel %vm351, %v344, %v348
    %v353 = vand.u32 2147483647, %v343
    %vm354 = vcmp.eq.f32.partialorder %v353, 8.507059e+37
    %v355 = vand.u32 %v343, 2147483648
    %v356 = vor.u32 1.1754944e-38, %v355
    %v357 = vsel %vm354, %v356, %v352
    %v358 = vmul.f32 1.0, %v357
    %v359 = vtanh.pop %v285
    %v360 = vxor.u32 %v298, 2147483648
    %v361 = vmul.f32 %v360, 1.442695
    %v362 = vpow.pop %v361
    %v363 = vadd.f32 %v362, 1.0
    %v364 = vrcp.pop %v363
    %v365 = vmul.f32 %v363, %v364
    %v366 = vsub.f32 1.0, %v365
    %v367 = vmul.f32 %v364, %v366
    %v368 = vadd.f32 %v364, %v367
    %vm369 = vweird.f32 %v363
    %vm370 = vweird.f32 %v364
    %vm371 = vmor %vm369, %vm370
    %v372 = vsel %vm371, %v364, %v368
    %v373 = vand.u32 2147483647, %v363
    %vm374 = vcmp.eq.f32.partialorder %v373, 8.507059e+37
    %v375 = vand.u32 %v363, 2147483648
    %v376 = vor.u32 1.1754944e-38, %v375
    %v377 = vsel %vm374, %v376, %v372
    %v378 = vmul.f32 1.0, %v377
    %v379 = vmul.f32 %v358, %v359
    %v380 = vtanh.pop %v379
    %v381 = vmul.f32 %v378, %v380
    %v382 = vxor.u32 %v311, 2147483648
    %v383 = vmul.f32 %v382, 1.442695
    %v384 = vpow.pop %v383
    %v385 = vadd.f32 %v384, 1.0
    %v386 = vrcp.pop %v385
    %v387 = vmul.f32 %v385, %v386
    %v388 = vsub.f32 1.0, %v387
    %v389 = vmul.f32 %v386, %v388
    %v390 = vadd.f32 %v386, %v389
    %vm391 = vweird.f32 %v385
    %vm392 = vweird.f32 %v386
    %vm393 = vmor %vm391, %vm392
    %v394 = vsel %vm393, %v386, %v390
    %v395 = vand.u32 2147483647, %v385
    %vm396 = vcmp.eq.f32.partialorder %v395, 8.507059e+37
    %v397 = vand.u32 %v385, 2147483648
    %v398 = vor.u32 1.1754944e-38, %v397
    %v399 = vsel %vm396, %v398, %v394
    %v400 = vmul.f32 1.0, %v399
    %v401 = vtanh.pop %v324
    %v402 = vxor.u32 %v337, 2147483648
    %v403 = vmul.f32 %v402, 1.442695
    %v404 = vpow.pop %v403
    %v405 = vadd.f32 %v404, 1.0
    %v406 = vrcp.pop %v405
    %v407 = vmul.f32 %v405, %v406
    %v408 = vsub.f32 1.0, %v407
    %v409 = vmul.f32 %v406, %v408
    %v410 = vadd.f32 %v406, %v409
    %vm411 = vweird.f32 %v405
    %vm412 = vweird.f32 %v406
    %vm413 = vmor %vm411, %vm412
    %v414 = vsel %vm413, %v406, %v410
    %v415 = vand.u32 2147483647, %v405
    %vm416 = vcmp.eq.f32.partialorder %v415, 8.507059e+37
    %v417 = vand.u32 %v405, 2147483648
    %v418 = vor.u32 1.1754944e-38, %v417
    %v419 = vsel %vm416, %v418, %v414
    %v420 = vmul.f32 1.0, %v419
    %v421 = vmul.f32 %v400, %v401
    %v422 = vtanh.pop %v421
    %v423 = vmul.f32 %v420, %v422
    %v424 = vld [vmem:[#allocation8] sm:$0xff]
    %v425 = vld [vmem:[#allocation8 + $0x8] sm:$0xff]
    %v426 = vld [vmem:[#allocation8 + $0x10] sm:$0xff]
    %v427 = vld [vmem:[#allocation8 + $0x18] sm:$0xff]
    %v428 = vld [vmem:[#allocation8 + $0x20] sm:$0xff]
    %v429 = vld [vmem:[#allocation8 + $0x28] sm:$0xff]
    %v430 = vld [vmem:[#allocation8 + $0x30] sm:$0xff]
    %v431 = vld [vmem:[#allocation8 + $0x38] sm:$0xff]
    %v432 = vld [vmem:[#allocation8 + $0x40] sm:$0xff]
    %v433 = vld [vmem:[#allocation8 + $0x48] sm:$0xff]
    %v434 = vld [vmem:[#allocation8 + $0x50] sm:$0xff]
    %v435 = vld [vmem:[#allocation8 + $0x58] sm:$0xff]
    %v436 = vld [vmem:[#allocation8 + $0x60] sm:$0xff]
    %v437 = vld [vmem:[#allocation8 + $0x68] sm:$0xff]
    %v438 = vld [vmem:[#allocation8 + $0x70] sm:$0xff]
    %v439 = vld [vmem:[#allocation8 + $0x78] sm:$0xff]
    %v440 = vld [vmem:[#allocation10] sm:$0xff]
    %v441 = vld [vmem:[#allocation10 + $0x8] sm:$0xff]
    %v442 = vld [vmem:[#allocation10 + $0x10] sm:$0xff]
    %v443 = vld [vmem:[#allocation10 + $0x18] sm:$0xff]
    %v444 = vld [vmem:[#allocation10 + $0x20] sm:$0xff]
    %v445 = vld [vmem:[#allocation10 + $0x28] sm:$0xff]
    %v446 = vld [vmem:[#allocation10 + $0x30] sm:$0xff]
    %v447 = vld [vmem:[#allocation10 + $0x38] sm:$0xff]
    %v448 = vld [vmem:[#allocation10 + $0x40] sm:$0xff]
    %v449 = vld [vmem:[#allocation10 + $0x48] sm:$0xff]
    %v450 = vld [vmem:[#allocation10 + $0x50] sm:$0xff]
    %v451 = vld [vmem:[#allocation10 + $0x58] sm:$0xff]
    %v452 = vld [vmem:[#allocation10 + $0x60] sm:$0xff]
    %v453 = vld [vmem:[#allocation10 + $0x68] sm:$0xff]
    %v454 = vld [vmem:[#allocation10 + $0x70] sm:$0xff]
    %v455 = vld [vmem:[#allocation10 + $0x78] sm:$0xff]
    %456 = vmatpush.msra.mxu0 %v455
    %457 = vmatpush.msra.mxu0 %v454
    %458 = vmatpush.msra.mxu0 %v453
    %459 = vmatpush.msra.mxu0 %v452
    %460 = vmatpush.msra.mxu0 %v451
    %461 = vmatpush.msra.mxu0 %v450
    %462 = vmatpush.msra.mxu0 %v449
    %463 = vmatpush.msra.mxu0 %v448
    %464 = vmatpush.msra.mxu0 %v447
    %465 = vmatpush.msra.mxu0 %v446
    %466 = vmatpush.msra.mxu0 %v445
    %467 = vmatpush.msra.mxu0 %v444
    %468 = vmatpush.msra.mxu0 %v443
    %469 = vmatpush.msra.mxu0 %v442
    %470 = vmatpush.msra.mxu0 %v441
    %471 = vmatpush.msra.mxu0 %v440
    %472 = vmatmul.f32.gmra.mxu0 %v423
    %v473 = vpop.f32.mrf.mxu0
    %v474 = vadd.f32 0.0, %v473
    %475 = vdwg.mxu0
    %476 = vmatpush.msra.mxu0 %v439
    %477 = vmatpush.msra.mxu0 %v438
    %478 = vmatpush.msra.mxu0 %v437
    %479 = vmatpush.msra.mxu0 %v436
    %480 = vmatpush.msra.mxu0 %v435
    %481 = vmatpush.msra.mxu0 %v434
    %482 = vmatpush.msra.mxu0 %v433
    %483 = vmatpush.msra.mxu0 %v432
    %484 = vmatpush.msra.mxu0 %v431
    %485 = vmatpush.msra.mxu0 %v430
    %486 = vmatpush.msra.mxu0 %v429
    %487 = vmatpush.msra.mxu0 %v428
    %488 = vmatpush.msra.mxu0 %v427
    %489 = vmatpush.msra.mxu0 %v426
    %490 = vmatpush.msra.mxu0 %v425
    %491 = vmatpush.msra.mxu0 %v424
    %492 = vmatmul.f32.gmra.mxu0 %v381
    %v493 = vpop.f32.mrf.mxu0
    %v494 = vadd.f32 %v474, %v493
    %495 = vdwg.mxu0
    %v496 = vld [vmem:[%s5] sm:$0x1]
    %v498 = vperm.slane %v496, 0
    %v500 = vadd.f32 %v494, %v498
    %501 = vst [vmem:[#allocation11] sm:$0xff] %v500
    // Predicated region
    $region46: #{tpu_custom_call.1} parent=1 // pred_check
      _
    $region47: #{tpu_custom_call.1} parent=1 // pred_check_branch
      %503 = sbr.rel (0) target = $region49
    $region48: #{tpu_custom_call.1} parent=1 // pred_region
      %505 = vsyncadd [#allocation4], 0
      %s507 = sshll.u32 [#allocation11], 4
      %s508 = int_to_ptr.vmem [resolvable:$true] %s507
      %s509 = sshll.u32 %s6, 4
      %s510 = int_to_ptr.hbm [resolvable:$true] %s509
      %512 = dma.vmem_to_hbm [thread:$0]  %s508, 128, %s510, [#allocation4]
    $region49: #{tpu_custom_call.1} parent=1 // pred_fallthru
      _
    // Predicated region
    $region50: #{tpu_custom_call.1} parent=1 // pred_check
      _
    $region51: #{tpu_custom_call.1} parent=1 // pred_check_branch
      %514 = sbr.rel (0) target = $region53
    $region52: #{tpu_custom_call.1} parent=1 // pred_region
      %516 = dma.done [#allocation4], 128
    $region53: #{tpu_custom_call.1} parent=1 // pred_fallthru
      _
    %517 = vsyncpa [#allocation3], 1
    %518 = vsyncpa [#allocation6], 1
    %519 = vsyncpa [#allocation9], 1
    %520 = vsyncpa [#allocation4], 1

</llo_original>
